<compile_context>
chip_gen: v7x
topology: tpu7x:2x2x1
jax: 0.10.0
libtpu: 0.0.40
codegen_flags: <defaults>
</compile_context>

<pallas_src>
import functools
from collections import namedtuple

import jax
import jax.numpy as jnp
from jax.experimental import pallas as pl
from jax.experimental.pallas import tpu as pltpu

LANES = 128
SUBLANES = 8


# ----------------------------------------------------------------------------
# Pallas kernel: fused sum((pr-gt)^2) and sum(|pr-gt|) over row tiles.
# Grid = (num_splits [parallel], steps_per_split [arbitrary/reduction]).
# VMEM accumulators hold elementwise partials; the full reduce + scalar store
# happens once, at the last reduction step.
# ----------------------------------------------------------------------------
def _loss_reduce_kernel(pr_ref, gt_ref, sq_ref, ab_ref, acc_sq, acc_ab):
    i = pl.program_id(1)

    @pl.when(i == 0)
    def _():
        acc_sq[...] = jnp.zeros_like(acc_sq)
        acc_ab[...] = jnp.zeros_like(acc_ab)

    diff = pr_ref[...].astype(jnp.float32) - gt_ref[...].astype(jnp.float32)
    acc_sq[...] += diff * diff          # VPU elementwise, no XLU per step
    acc_ab[...] += jnp.abs(diff)

    @pl.when(i == pl.num_programs(1) - 1)
    def _():
        sq_ref[0, 0] = jnp.sum(acc_sq[...])   # single cross-lane reduce
        ab_ref[0, 0] = jnp.sum(acc_ab[...])


def _ceil_div(a, b):
    return -(-a // b)


def _fused_loss_sums(pr, gt, *, max_block_rows=2048):
    """Returns (sum_sq, sum_abs) over all elements, computed in one fused pass.

    Inputs keep their original dtype (cast to f32 happens inside the kernel).
    """
    assert pr.shape == gt.shape
    n = pr.size

    # Rows of a lane-dense (rows, 128) slab, rounded up to a sublane multiple.
    rows = _ceil_div(n, LANES)
    rows = _ceil_div(rows, SUBLANES) * SUBLANES

    block_rows = min(max_block_rows, rows)          # small inputs: one block
    num_blocks = _ceil_div(rows, block_rows)
    num_splits = 2 if num_blocks >= 2 else 1        # v7x: one half per TC
    num_blocks = _ceil_div(num_blocks, num_splits) * num_splits
    steps = num_blocks // num_splits
    rows_pad = num_blocks * block_rows

    pr_flat = pr.reshape(-1)
    gt_flat = gt.reshape(-1)
    pad = rows_pad * LANES - n
    if pad:
        # Zero-pad BOTH inputs -> diff on the tail is exactly 0, so both sums
        # are unchanged.
        # TODO(synk): replace the padded copy with an in-kernel masked tail
        # block to avoid materializing padded arrays for non-aligned shapes.
        pr_flat = jnp.concatenate(
            [pr_flat, jnp.zeros((pad,), dtype=pr_flat.dtype)])
        gt_flat = jnp.concatenate(
            [gt_flat, jnp.zeros((pad,), dtype=gt_flat.dtype)])

    pr2d = pr_flat.reshape(rows_pad, LANES)   # metadata-only reshape, no cast
    gt2d = gt_flat.reshape(rows_pad, LANES)

    sq, ab = pl.pallas_call(
        _loss_reduce_kernel,
        out_shape=(
            jax.ShapeDtypeStruct((num_splits, 1), jnp.float32),
            jax.ShapeDtypeStruct((num_splits, 1), jnp.float32),
        ),
        grid_spec=pltpu.PrefetchScalarGridSpec(
            num_scalar_prefetch=0,
            grid=(num_splits, steps),
            in_specs=[
                pl.BlockSpec((block_rows, LANES),
                             lambda s, i: (s * steps + i, 0)),
                pl.BlockSpec((block_rows, LANES),
                             lambda s, i: (s * steps + i, 0)),
            ],
            out_specs=[
                pl.BlockSpec((1, 1), lambda s, i: (s, 0),
                             memory_space=pltpu.SMEM),
                pl.BlockSpec((1, 1), lambda s, i: (s, 0),
                             memory_space=pltpu.SMEM),
            ],
            scratch_shapes=[
                pltpu.VMEM((block_rows, LANES), jnp.float32),
                pltpu.VMEM((block_rows, LANES), jnp.float32),
            ],
        ),
        compiler_params=pltpu.CompilerParams(
            dimension_semantics=("parallel", "arbitrary"),
        ),
    )(pr2d, gt2d)

    # Combine the per-core partials (trivial (num_splits,)-sized sums).
    return jnp.sum(sq), jnp.sum(ab)


# Memoize the fused result so both calculators in the chain share ONE kernel
# launch (single pass over HBM) per (pr, gt) pair.
_SUMS_CACHE = {}


def _fused_loss_sums_cached(pr, gt):
    key = (id(pr), id(gt), tuple(pr.shape), tuple(gt.shape),
           str(pr.dtype), str(gt.dtype))
    hit = _SUMS_CACHE.get("entry")
    if hit is not None and hit[0] == key:
        return hit[1]
    res = _fused_loss_sums(pr, gt)
    _SUMS_CACHE["entry"] = (key, res)
    return res


# ----------------------------------------------------------------------------
# Glue mirroring the PyTorch abstractions (LossValue / LossTrail / chaining)
# ----------------------------------------------------------------------------
LossValue = namedtuple("LossValue", ["name", "loss", "weight"])
LossValue.__new__.__defaults__ = (1.0,)   # default weight, replaced by update


class MSELossCalculator:
    """Concrete AbstractLossCalculator: criterion = mean squared error."""

    def __str__(self):
        return type(self).__name__

    def __call__(self, pr, gt):
        sq, _ = _fused_loss_sums_cached(pr, gt)
        return LossValue(str(self), sq / jnp.float32(pr.size))


class L1LossCalculator:
    """Concrete AbstractLossCalculator: criterion = mean absolute error."""

    def __str__(self):
        return type(self).__name__

    def __call__(self, pr, gt):
        _, ab = _fused_loss_sums_cached(pr, gt)
        return LossValue(str(self), ab / jnp.float32(pr.size))


class CompositeLoss:
    """Mirrors the PyTorch CompositeLoss: weight-tagged chain of calculators."""

    def __init__(self, module, weight=1.0, follow=None):
        self.module = module
        self.weight = weight
        self.follow = follow

    def __call__(self, pr, gt):
        trail = []  # LossTrail
        value = self.update(self.module(pr, gt), weight=self.weight)
        if isinstance(value, list):
            trail += value
        else:
            trail.append(value)
        if self.follow is not None:
            trail += self.follow(pr, gt)
        return trail

    def update(self, loss, **kwargs):
        # singledispatch on LossValue (namedtuple) vs LossTrail (list)
        if isinstance(loss, LossValue):
            return loss._replace(**kwargs)
        if isinstance(loss, list):
            return loss  # weight already embedded in each LossValue
        raise TypeError("Loss type {} not supported".format(type(loss)))


# ----------------------------------------------------------------------------
if __name__ == "__main__":
    key = jax.random.PRNGKey(0)
    k1, k2 = jax.random.split(key)

    # NCHW inputs, small shapes consistent with an image-loss module.
    B, C, H, W = 2, 4, 16, 16
    pr = jax.random.normal(k1, (B, C, H, W), dtype=jnp.float32)
    gt = jax.random.normal(k2, (B, C, H, W), dtype=jnp.float32)

    # CompositeLoss(MSE, w=0.7, follow=CompositeLoss(L1, w=0.3))
    composite = CompositeLoss(
        MSELossCalculator(), weight=0.7,
        follow=CompositeLoss(L1LossCalculator(), weight=0.3),
    )

    trail = composite(pr, gt)
    for entry in trail:
        jax.block_until_ready(entry.loss)

    # Cross-check against a pure-JAX reference of the same semantics.
    ref_mse = jnp.mean((pr - gt) ** 2)
    ref_l1 = jnp.mean(jnp.abs(pr - gt))
    assert jnp.allclose(trail[0].loss, ref_mse, rtol=1e-5, atol=1e-6)
    assert jnp.allclose(trail[1].loss, ref_l1, rtol=1e-5, atol=1e-6)
    assert trail[0].weight == 0.7 and trail[1].weight == 0.3
    assert trail[0].name == "MSELossCalculator"
    assert trail[1].name == "L1LossCalculator"

    print("KERNEL_OK")
</pallas_src>

<mosaic_0001>
module attributes {stable_mosaic.version = 11 : i64} {
  func.func @_loss_reduce_kernel(%arg0: i32, %arg1: i32, %arg2: memref<16x128xf32, #tpu.memory_space<vmem>>, %arg3: memref<16x128xf32, #tpu.memory_space<vmem>>, %arg4: memref<1x1xf32, #tpu.memory_space<smem>>, %arg5: memref<1x1xf32, #tpu.memory_space<smem>>, %arg6: memref<16x128xf32, #tpu.memory_space<vmem>>, %arg7: memref<16x128xf32, #tpu.memory_space<vmem>>) attributes {dimension_semantics = [#tpu.dimension_semantics<parallel>, #tpu.dimension_semantics<arbitrary>], iteration_bounds = array<i64: 1, 1>, scalar_prefetch = 0 : i64, scratch_operands = 2 : i64, tpu.core_type = #tpu.core_type<tc>, window_params = [{transform_indices = @transform_0, window_bounds = array<i64: 16, 128>}, {transform_indices = @transform_1, window_bounds = array<i64: 16, 128>}, {transform_indices = @transform_2, window_bounds = array<i64: 1, 1>}, {transform_indices = @transform_3, window_bounds = array<i64: 1, 1>}]} {
    %c0_i32 = arith.constant 0 : i32
    %0 = arith.cmpi eq, %arg1, %c0_i32 : i32
    %1 = arith.extui %0 : i1 to i32
    %c0_i32_0 = arith.constant 0 : i32
    %2 = arith.cmpi ne, %1, %c0_i32_0 : i32
    scf.if %2 {
      %cst = arith.constant 0.000000e+00 : f32
      %17 = vector.broadcast %cst : f32 to vector<16x128xf32>
      %c0_14 = arith.constant 0 : index
      %c0_15 = arith.constant 0 : index
      %18 = vector.load %arg6[%c0_14, %c0_15] : memref<16x128xf32, #tpu.memory_space<vmem>>, vector<16x128xf32>
      tpu.vector_store %arg6[%c0_14, %c0_15], %17 {strides = array<i32>} : memref<16x128xf32, #tpu.memory_space<vmem>>, vector<16x128xf32>,
      %cst_16 = arith.constant 0.000000e+00 : f32
      %19 = vector.broadcast %cst_16 : f32 to vector<16x128xf32>
      %c0_17 = arith.constant 0 : index
      %c0_18 = arith.constant 0 : index
      %20 = vector.load %arg7[%c0_17, %c0_18] : memref<16x128xf32, #tpu.memory_space<vmem>>, vector<16x128xf32>
      tpu.vector_store %arg7[%c0_17, %c0_18], %19 {strides = array<i32>} : memref<16x128xf32, #tpu.memory_space<vmem>>, vector<16x128xf32>,
    } else {
    }
    %c0 = arith.constant 0 : index
    %c0_1 = arith.constant 0 : index
    %3 = vector.load %arg2[%c0, %c0_1] : memref<16x128xf32, #tpu.memory_space<vmem>>, vector<16x128xf32>
    %c0_2 = arith.constant 0 : index
    %c0_3 = arith.constant 0 : index
    %4 = vector.load %arg3[%c0_2, %c0_3] : memref<16x128xf32, #tpu.memory_space<vmem>>, vector<16x128xf32>
    %5 = arith.subf %3, %4 : vector<16x128xf32>
    %c0_4 = arith.constant 0 : index
    %c0_5 = arith.constant 0 : index
    %6 = vector.load %arg6[%c0_4, %c0_5] : memref<16x128xf32, #tpu.memory_space<vmem>>, vector<16x128xf32>
    %7 = arith.mulf %5, %5 : vector<16x128xf32>
    %8 = arith.addf %6, %7 : vector<16x128xf32>
    %c0_6 = arith.constant 0 : index
    %c0_7 = arith.constant 0 : index
    %9 = vector.load %arg6[%c0_6, %c0_7] : memref<16x128xf32, #tpu.memory_space<vmem>>, vector<16x128xf32>
    tpu.vector_store %arg6[%c0_6, %c0_7], %8 {strides = array<i32>} : memref<16x128xf32, #tpu.memory_space<vmem>>, vector<16x128xf32>,
    %c0_8 = arith.constant 0 : index
    %c0_9 = arith.constant 0 : index
    %10 = vector.load %arg7[%c0_8, %c0_9] : memref<16x128xf32, #tpu.memory_space<vmem>>, vector<16x128xf32>
    %11 = math.absf %5 : vector<16x128xf32>
    %12 = arith.addf %10, %11 : vector<16x128xf32>
    %c0_10 = arith.constant 0 : index
    %c0_11 = arith.constant 0 : index
    %13 = vector.load %arg7[%c0_10, %c0_11] : memref<16x128xf32, #tpu.memory_space<vmem>>, vector<16x128xf32>
    tpu.vector_store %arg7[%c0_10, %c0_11], %12 {strides = array<i32>} : memref<16x128xf32, #tpu.memory_space<vmem>>, vector<16x128xf32>,
    %c0_i32_12 = arith.constant 0 : i32
    %14 = arith.cmpi eq, %arg1, %c0_i32_12 : i32
    %15 = arith.extui %14 : i1 to i32
    %c0_i32_13 = arith.constant 0 : i32
    %16 = arith.cmpi ne, %15, %c0_i32_13 : i32
    scf.if %16 {
      %c0_14 = arith.constant 0 : index
      %c0_15 = arith.constant 0 : index
      %17 = vector.load %arg6[%c0_14, %c0_15] : memref<16x128xf32, #tpu.memory_space<vmem>>, vector<16x128xf32>
      %18 = vector.shape_cast %17 : vector<16x128xf32> to vector<1x16x128xf32>
      %cst = arith.constant dense<0.000000e+00> : vector<1xf32>
      %19 = vector.multi_reduction <add>, %18, %cst [1, 2] : vector<1x16x128xf32> to vector<1xf32>
      %20 = vector.shape_cast %19 : vector<1xf32> to vector<1x1x1xf32>
      %21 = vector.extract %20[0, 0, 0] : f32 from vector<1x1x1xf32>
      %c0_16 = arith.constant 0 : index
      %c0_17 = arith.constant 0 : index
      %22 = memref.load %arg4[%c0_16, %c0_17] : memref<1x1xf32, #tpu.memory_space<smem>>
      memref.store %21, %arg4[%c0_16, %c0_17] : memref<1x1xf32, #tpu.memory_space<smem>>
      %c0_18 = arith.constant 0 : index
      %c0_19 = arith.constant 0 : index
      %23 = vector.load %arg7[%c0_18, %c0_19] : memref<16x128xf32, #tpu.memory_space<vmem>>, vector<16x128xf32>
      %24 = vector.shape_cast %23 : vector<16x128xf32> to vector<1x16x128xf32>
      %cst_20 = arith.constant dense<0.000000e+00> : vector<1xf32>
      %25 = vector.multi_reduction <add>, %24, %cst_20 [1, 2] : vector<1x16x128xf32> to vector<1xf32>
      %26 = vector.shape_cast %25 : vector<1xf32> to vector<1x1x1xf32>
      %27 = vector.extract %26[0, 0, 0] : f32 from vector<1x1x1xf32>
      %c0_21 = arith.constant 0 : index
      %c0_22 = arith.constant 0 : index
      %28 = memref.load %arg5[%c0_21, %c0_22] : memref<1x1xf32, #tpu.memory_space<smem>>
      memref.store %27, %arg5[%c0_21, %c0_22] : memref<1x1xf32, #tpu.memory_space<smem>>
    } else {
    }
    return
  }
  func.func @transform_0(%arg0: i32, %arg1: i32) -> (i32, i32) {
    %c1_i32 = arith.constant 1 : i32
    %0 = arith.muli %arg0, %c1_i32 : i32
    %1 = arith.addi %0, %arg1 : i32
    %c0_i32 = arith.constant 0 : i32
    %c0_i32_0 = arith.constant 0 : i32
    return %1, %c0_i32 : i32, i32
  }
  func.func @transform_1(%arg0: i32, %arg1: i32) -> (i32, i32) {
    %c1_i32 = arith.constant 1 : i32
    %0 = arith.muli %arg0, %c1_i32 : i32
    %1 = arith.addi %0, %arg1 : i32
    %c0_i32 = arith.constant 0 : i32
    %c0_i32_0 = arith.constant 0 : i32
    return %1, %c0_i32 : i32, i32
  }
  func.func @transform_2(%arg0: i32, %arg1: i32) -> (i32, i32) {
    %c0_i32 = arith.constant 0 : i32
    %c0_i32_0 = arith.constant 0 : i32
    return %arg0, %c0_i32 : i32, i32
  }
  func.func @transform_3(%arg0: i32, %arg1: i32) -> (i32, i32) {
    %c0_i32 = arith.constant 0 : i32
    %c0_i32_0 = arith.constant 0 : i32
    return %arg0, %c0_i32 : i32, i32
  }
}

</mosaic_0001>

<llo_original>
// kernel: tpu_custom_call.1
$region0: #{tpu_custom_call.1}
  #allocation0 [shape = 'u32[]', space=smem, size = 0x4, offset = 0x4, fixed_abs, tag = 'smem constant byte address 0x4 - core index']
  #allocation1 [shape = 'u32[144,128]{1,0:T(1,128)}', space=vmem, size = 0x12000, scoped, tag = 'internal scratch']
  #allocation2 [shape = 'f32[16,128]{1,0:T(8,128)}', space=vmem, size = 0x2000, scoped, tag = 'scratch operand']
  #allocation3 [shape = 'f32[16,128]{1,0:T(8,128)}', space=vmem, size = 0x2000, scoped, tag = 'scratch operand']
  %s0 = inlined_call_operand.hbm [shape: f32[16,128], index: 0, kind: input, shape index: {}]
  %s1 = inlined_call_operand.hbm [shape: f32[16,128], index: 1, kind: input, shape index: {}]
  %s2 = inlined_call_operand.hbm [shape: f32[1,1], index: 2, kind: output, shape index: {0}]
  %s3 = inlined_call_operand.hbm [shape: f32[1,1], index: 3, kind: output, shape index: {1}]
  %4 = xla_tuple %s2, %s3
  %s5 = sld [smem:[#allocation0]]
  $region42: #{tpu_custom_call.1} parent=0
    _
  %s7 = ssub.s32 1, %s5
  %s8 = scalar_select 0, %s7, %s5
  $region1: #{tpu_custom_call.1} parent=0
    #allocation4 [shape = 'u8[8192]{0}', space=vmem, size = 0x2000, scoped, tag = 'input window, operand 0, single buffered']
    #allocation5 [shape = 's32[1]{0}', space=sflag, size = 0x4, scoped, tag = 'scoped memory for tpu_custom_call.1']
    #allocation6 [shape = 's32[1]{0}', space=sflag, size = 0x4, scoped, tag = 'scoped memory for tpu_custom_call.1']
    #allocation7 [shape = 'u8[8192]{0}', space=vmem, size = 0x2000, scoped, tag = 'input window, operand 1, single buffered']
    #allocation8 [shape = 's32[1]{0}', space=sflag, size = 0x4, scoped, tag = 'scoped memory for tpu_custom_call.1']
    #allocation9 [shape = 'u8[512]{0}', space=smem, size = 0x200, scoped, tag = 'output window, operand 0, single buffered']
    #allocation10 [shape = 'u8[512]{0}', space=smem, size = 0x200, scoped, tag = 'output window, operand 1, single buffered']
    #allocation11 [shape = 's32[1]{0}', space=sflag, size = 0x4, scoped, tag = 'scoped memory for tpu_custom_call.1']
    %9 = vsyncpa [#allocation5], 0
    %10 = vsyncpa [#allocation8], 0
    %11 = vsyncpa [#allocation6], 0
    %12 = vsyncpa [#allocation11], 0
    // Predicated region
    $region2: #{tpu_custom_call.1} parent=1 // pred_check
      _
    $region3: #{tpu_custom_call.1} parent=1 // pred_check_branch
      %14 = sbr.rel (0) target = $region5
    $region4: #{tpu_custom_call.1} parent=1 // pred_region
      %s15 = sadd.s32 0, 0
      %s16 = smul.u32 2, %s15
      %s18 = ssub.s32 256, 256
      %19 = vsyncadd [#allocation5], %s18
      %s20 = smul.addr %s16, 128
      %s21 = scalar_lea.hbm %s0, %s20
      %s22 = sshll.u32 [#allocation4], 4
      %s23 = int_to_ptr.vmem [resolvable:$true] %s22
      %28 = dma.hbm_to_vmem [thread:$0]  %s21, 256, %s23, [#allocation5], 128, 128, 8
    $region5: #{tpu_custom_call.1} parent=1 // pred_fallthru
      _
    // Predicated region
    $region6: #{tpu_custom_call.1} parent=1 // pred_check
      _
    $region7: #{tpu_custom_call.1} parent=1 // pred_check_branch
      %30 = sbr.rel (0) target = $region9
    $region8: #{tpu_custom_call.1} parent=1 // pred_region
      %s31 = sadd.s32 0, 0
      %s32 = smul.u32 2, %s31
      %s34 = ssub.s32 256, 256
      %35 = vsyncadd [#allocation8], %s34
      %s36 = smul.addr %s32, 128
      %s37 = scalar_lea.hbm %s1, %s36
      %s38 = sshll.u32 [#allocation7], 4
      %s39 = int_to_ptr.vmem [resolvable:$true] %s38
      %44 = dma.hbm_to_vmem [thread:$0]  %s37, 256, %s39, [#allocation8], 128, 128, 8
    $region9: #{tpu_custom_call.1} parent=1 // pred_fallthru
      _
    // Predicated region
    $region10: #{tpu_custom_call.1} parent=1 // pred_check
      _
    $region11: #{tpu_custom_call.1} parent=1 // pred_check_branch
      %46 = sbr.rel (0) target = $region13
    $region12: #{tpu_custom_call.1} parent=1 // pred_region
      %47 = dma.done [#allocation5], 256
    $region13: #{tpu_custom_call.1} parent=1 // pred_fallthru
      _
    // Predicated region
    $region14: #{tpu_custom_call.1} parent=1 // pred_check
      _
    $region15: #{tpu_custom_call.1} parent=1 // pred_check_branch
      %49 = sbr.rel (0) target = $region17
    $region16: #{tpu_custom_call.1} parent=1 // pred_region
      %50 = dma.done [#allocation8], 256
    $region17: #{tpu_custom_call.1} parent=1 // pred_fallthru
      _
    %s51 = sadd.s32 0, 0
    %s52 = smul.u32 2, %s51
    %s53 = sadd.s32 0, 0
    %s54 = smul.u32 2, %s53
    %p55 = scmp.eq.s32.totalorder 0, 0
    // Predicated region
    $region18: #{tpu_custom_call.1} parent=1 // pred_check
      %p56 = pneg %p55
    $region19: #{tpu_custom_call.1} parent=1 // pred_check_branch
      %58 = sbr.rel (%p56) target = $region21
    $region20: #{tpu_custom_call.1} parent=1 // pred_region
      %59 = vst [vmem:[#allocation2] sm:$0xff] 0.0
      %60 = vst [vmem:[#allocation2 + $0x8] sm:$0xff] 0.0
      %61 = vst [vmem:[#allocation3] sm:$0xff] 0.0
      %62 = vst [vmem:[#allocation3 + $0x8] sm:$0xff] 0.0
    $region21: #{tpu_custom_call.1} parent=1 // pred_fallthru
      _
    %v63 = vld [vmem:[#allocation4] sm:$0xff]
    %v64 = vld [vmem:[#allocation4 + $0x8] sm:$0xff]
    %v65 = vld [vmem:[#allocation7] sm:$0xff]
    %v66 = vld [vmem:[#allocation7 + $0x8] sm:$0xff]
    %v67 = vsub.f32 %v63, %v65
    %v68 = vsub.f32 %v64, %v66
    %v69 = vld [vmem:[#allocation2] sm:$0xff]
    %v70 = vld [vmem:[#allocation2 + $0x8] sm:$0xff]
    %v71 = vmul.f32 %v67, %v67
    %v72 = vmul.f32 %v68, %v68
    %v73 = vadd.f32 %v69, %v71
    %v74 = vadd.f32 %v70, %v72
    %75 = vst [vmem:[#allocation2] sm:$0xff] %v73
    %76 = vst [vmem:[#allocation2 + $0x8] sm:$0xff] %v74
    %v77 = vld [vmem:[#allocation3] sm:$0xff]
    %v78 = vld [vmem:[#allocation3 + $0x8] sm:$0xff]
    %v79 = vand.u32 2147483647, %v67
    %v80 = vand.u32 2147483647, %v68
    %v81 = vadd.f32 %v77, %v79
    %v82 = vadd.f32 %v78, %v80
    %83 = vst [vmem:[#allocation3] sm:$0xff] %v81
    %84 = vst [vmem:[#allocation3 + $0x8] sm:$0xff] %v82
    // Predicated region
    $region22: #{tpu_custom_call.1} parent=1 // pred_check
      %p85 = pneg %p55
    $region23: #{tpu_custom_call.1} parent=1 // pred_check_branch
      %87 = sbr.rel (%p85) target = $region25
    $region24: #{tpu_custom_call.1} parent=1 // pred_region
      %v88 = vld [vmem:[#allocation2] sm:$0xff]
      %v89 = vld [vmem:[#allocation2 + $0x8] sm:$0xff]
      %v90 = vadd.f32 %v88, %v89
      %91 = vadd.xlane.f32.xlu0 %v90
      %v92 = vpop.xlane.xlu0 %91
      %v93 = vrot.slane %v92, 4
      %v94 = vadd.f32 %v92, %v93
      %v95 = vrot.slane %v94, 2
      %v96 = vadd.f32 %v94, %v95
      %v97 = vrot.slane %v96, 1
      %v98 = vadd.f32 %v96, %v97
      %s99 = vtos %v98
      %s100 = scalar_lea.smem [#allocation9], 0
      %101 = sst [smem:[%s100]] %s99
      %v102 = vld [vmem:[#allocation3] sm:$0xff]
      %v103 = vld [vmem:[#allocation3 + $0x8] sm:$0xff]
      %v104 = vadd.f32 %v102, %v103
      %105 = vadd.xlane.f32.xlu0 %v104
      %v106 = vpop.xlane.xlu0 %105
      %v107 = vrot.slane %v106, 4
      %v108 = vadd.f32 %v106, %v107
      %v109 = vrot.slane %v108, 2
      %v110 = vadd.f32 %v108, %v109
      %v111 = vrot.slane %v110, 1
      %v112 = vadd.f32 %v110, %v111
      %s113 = vtos %v112
      %s114 = scalar_lea.smem [#allocation10], 0
      %115 = sst [smem:[%s114]] %s113
    $region25: #{tpu_custom_call.1} parent=1 // pred_fallthru
      _
    // Predicated region
    $region26: #{tpu_custom_call.1} parent=1 // pred_check
      _
    $region27: #{tpu_custom_call.1} parent=1 // pred_check_branch
      %117 = sbr.rel (0) target = $region29
    $region28: #{tpu_custom_call.1} parent=1 // pred_region
      %s119 = ssub.s32 16, 16
      %120 = vsyncadd [#allocation6], %s119
      %123 = dma.smem_to_hbm [#allocation9], 16, %s2, [#allocation6]
    $region29: #{tpu_custom_call.1} parent=1 // pred_fallthru
      _
    // Predicated region
    $region30: #{tpu_custom_call.1} parent=1 // pred_check
      _
    $region31: #{tpu_custom_call.1} parent=1 // pred_check_branch
      %125 = sbr.rel (0) target = $region33
    $region32: #{tpu_custom_call.1} parent=1 // pred_region
      %s127 = ssub.s32 16, 16
      %128 = vsyncadd [#allocation11], %s127
      %131 = dma.smem_to_hbm [#allocation10], 16, %s3, [#allocation11]
    $region33: #{tpu_custom_call.1} parent=1 // pred_fallthru
      _
    // Predicated region
    $region34: #{tpu_custom_call.1} parent=1 // pred_check
      _
    $region35: #{tpu_custom_call.1} parent=1 // pred_check_branch
      %133 = sbr.rel (0) target = $region37
    $region36: #{tpu_custom_call.1} parent=1 // pred_region
      %134 = dma.done [#allocation6], 16
    $region37: #{tpu_custom_call.1} parent=1 // pred_fallthru
      _
    // Predicated region
    $region38: #{tpu_custom_call.1} parent=1 // pred_check
      _
    $region39: #{tpu_custom_call.1} parent=1 // pred_check_branch
      %136 = sbr.rel (0) target = $region41
    $region40: #{tpu_custom_call.1} parent=1 // pred_region
      %137 = dma.done [#allocation11], 16
    $region41: #{tpu_custom_call.1} parent=1 // pred_fallthru
      _
    %138 = sfence
    %139 = vsyncpa [#allocation5], 1
    %140 = vsyncpa [#allocation8], 1
    %141 = vsyncpa [#allocation6], 1
    %142 = vsyncpa [#allocation11], 1

</llo_original>
